<compile_context>
chip_gen: v6e
topology: v6e:2x2x1
jax: 0.10.0
libtpu: 0.0.40
codegen_flags: <defaults>
</compile_context>

<pallas_src>
import jax
import jax.numpy as jnp
from jax.experimental import pallas as pl
from jax.experimental.pallas import tpu as pltpu


def _pick_depth_tile(D, n, H, W, target_out_bytes=4 << 20, max_unroll=32):
    """Largest divisor of D whose f32 output block stays under ~target bytes."""
    per_depth_out_bytes = (n ** 3) * H * W * 4          # f32 output per input depth
    cap = max(1, min(max_unroll, target_out_bytes // max(per_depth_out_bytes, 1)))
    dt = 1
    for cand in range(1, D + 1):
        if D % cand == 0 and cand <= cap:
            dt = cand
    return dt


def unpool3d(x, unpool_size=2, padding=0):
    """x: (N, C, D, H, W) -> (N, C, n*D, n*H, n*W), float32."""
    n, p = int(unpool_size), int(padding)
    # PyTorch's strided assignment is only shape-consistent for 0 <= p < n.
    assert 0 <= p < n, "Unpool3DLayer requires 0 <= padding < unpool_size"

    N, C, D, H, W = x.shape
    B = N * C
    Dn, Hn, Wn = n * D, n * H, n * W
    nWn = n * Wn                      # flattened (n, n*W) minor group = n*n*W

    Dt = _pick_depth_tile(D, n, H, W)

    xr = x.reshape(B, D, H, W).astype(jnp.float32)

    def kernel(x_ref, o_ref):
        # x_ref: (1, Dt, H, W)   o_ref: (1, n*Dt, H, nWn)
        # Lane-scatter selection matrix (built in-kernel, no HBM input):
        #   G[w, p*Wn + n*w + p] = 1, i.e. column c = n*w + p*(Wn + 1).
        wi = jax.lax.broadcasted_iota(jnp.int32, (W, nWn), 0)
        ci = jax.lax.broadcasted_iota(jnp.int32, (W, nWn), 1)
        G = (ci == n * wi + p * (Wn + 1)).astype(jnp.float32)

        # Single hoisted zero broadcast (JAX does not CSE broadcast_in_dim).
        zero_plane = jnp.zeros((H, nWn), jnp.float32)

        for dt in range(Dt):                        # static unroll (Dt <= 32)
            x2 = x_ref[0, dt]                       # (H, W)
            t = jnp.dot(x2, G, preferred_element_type=jnp.float32)   # (H, nWn)
            for r in range(n):                      # each plane written exactly once
                o_ref[0, n * dt + r] = t if r == p else zero_plane

    out = pl.pallas_call(
        kernel,
        out_shape=jax.ShapeDtypeStruct((B, Dn, H, nWn), jnp.float32),
        grid=(B, D // Dt),
        in_specs=[pl.BlockSpec((1, Dt, H, W), lambda b, d: (b, d, 0, 0))],
        out_specs=pl.BlockSpec((1, n * Dt, H, nWn), lambda b, d: (b, d, 0, 0)),
        compiler_params=pltpu.CompilerParams(
            dimension_semantics=("parallel", "parallel"),
            vmem_limit_bytes=32 << 20,
        ),
    )(xr)

    # (B, Dn, H, n*n*W) and (N, C, Dn, Hn, Wn) share the same contiguous
    # layout, so this reshape is metadata-only.
    return out.reshape(N, C, Dn, Hn, Wn)


if __name__ == "__main__":
    key = jax.random.PRNGKey(0)

    # Primary config (matches the original module's typical use).
    N, C, D, H, W = 2, 4, 8, 8, 16
    n, p = 2, 0
    x = jax.random.normal(key, (N, C, D, H, W), dtype=jnp.float32)

    out = jax.block_until_ready(unpool3d(x, unpool_size=n, padding=p))

    ref = jnp.zeros((N, C, n * D, n * H, n * W), jnp.float32)
    ref = ref.at[:, :, p::n, p::n, p::n].set(x)
    assert out.shape == (N, C, n * D, n * H, n * W)
    assert out.dtype == jnp.float32
    assert jnp.allclose(out, ref), "mismatch vs reference (p=0)"

    # Padding path check (p=1, n=2).
    x2 = jax.random.normal(jax.random.PRNGKey(1), (1, 2, 4, 8, 8), dtype=jnp.float32)
    out2 = jax.block_until_ready(unpool3d(x2, unpool_size=2, padding=1))
    ref2 = jnp.zeros((1, 2, 8, 16, 16), jnp.float32)
    ref2 = ref2.at[:, :, 1::2, 1::2, 1::2].set(x2)
    assert jnp.allclose(out2, ref2), "mismatch vs reference (p=1)"

    print("KERNEL_OK")
</pallas_src>

<mosaic_0001>
module attributes {stable_mosaic.version = 11 : i64} {
  func.func @kernel(%arg0: i32, %arg1: i32, %arg2: memref<1x8x8x16xf32, #tpu.memory_space<vmem>>, %arg3: memref<1x16x8x64xf32, #tpu.memory_space<vmem>>) attributes {dimension_semantics = [#tpu.dimension_semantics<parallel>, #tpu.dimension_semantics<parallel>], iteration_bounds = array<i64: 8, 1>, scalar_prefetch = 0 : i64, scratch_operands = 0 : i64, tpu.core_type = #tpu.core_type<tc>, window_params = [{transform_indices = @transform_0, window_bounds = array<i64: 1, 8, 8, 16>}, {transform_indices = @transform_1, window_bounds = array<i64: 1, 16, 8, 64>}]} {
    %0 = tpu.iota {dimensions = array<i32: 0>} : vector<16x64xi32>
    %1 = tpu.iota {dimensions = array<i32: 1>} : vector<16x64xi32>
    %c2_i32 = arith.constant 2 : i32
    %2 = vector.broadcast %c2_i32 : i32 to vector<16x64xi32>
    %3 = arith.muli %2, %0 : vector<16x64xi32>
    %c0_i32 = arith.constant 0 : i32
    %4 = vector.broadcast %c0_i32 : i32 to vector<16x64xi32>
    %5 = arith.addi %3, %4 : vector<16x64xi32>
    %6 = arith.cmpi eq, %1, %5 : vector<16x64xi32>
    %7 = arith.extui %6 : vector<16x64xi1> to vector<16x64xi32>
    %8 = arith.sitofp %7 : vector<16x64xi32> to vector<16x64xf32>
    %cst = arith.constant 0.000000e+00 : f32
    %9 = vector.broadcast %cst : f32 to vector<8x64xf32>
    %c0 = arith.constant 0 : index
    %c0_0 = arith.constant 0 : index
    %c0_1 = arith.constant 0 : index
    %c0_2 = arith.constant 0 : index
    %10 = vector.load %arg2[%c0, %c0_0, %c0_1, %c0_2] : memref<1x8x8x16xf32, #tpu.memory_space<vmem>>, vector<1x1x8x16xf32>
    %11 = vector.shape_cast %10 : vector<1x1x8x16xf32> to vector<8x16xf32>
    %cst_3 = arith.constant dense<0.000000e+00> : vector<8x64xf32>
    %12 = tpu.matmul %11, %8, %cst_3 {dimension_numbers = #tpu.dot_dimension_numbers<[1], [0], [0], [1], [0, 0, 1, 1], [], []>} : vector<8x16xf32>, vector<16x64xf32>, vector<8x64xf32> -> vector<8x64xf32>
    %c0_4 = arith.constant 0 : index
    %c0_5 = arith.constant 0 : index
    %c0_6 = arith.constant 0 : index
    %c0_7 = arith.constant 0 : index
    %13 = vector.load %arg3[%c0_4, %c0_5, %c0_6, %c0_7] : memref<1x16x8x64xf32, #tpu.memory_space<vmem>>, vector<1x1x8x64xf32>
    %14 = vector.shape_cast %13 : vector<1x1x8x64xf32> to vector<8x64xf32>
    %15 = vector.shape_cast %12 : vector<8x64xf32> to vector<1x1x8x64xf32>
    tpu.vector_store %arg3[%c0_4, %c0_5, %c0_6, %c0_7], %15 {strides = array<i32>} : memref<1x16x8x64xf32, #tpu.memory_space<vmem>>, vector<1x1x8x64xf32>,
    %c0_8 = arith.constant 0 : index
    %c1 = arith.constant 1 : index
    %c0_9 = arith.constant 0 : index
    %c0_10 = arith.constant 0 : index
    %16 = vector.load %arg3[%c0_8, %c1, %c0_9, %c0_10] : memref<1x16x8x64xf32, #tpu.memory_space<vmem>>, vector<1x1x8x64xf32>
    %17 = vector.shape_cast %16 : vector<1x1x8x64xf32> to vector<8x64xf32>
    %18 = vector.shape_cast %9 : vector<8x64xf32> to vector<1x1x8x64xf32>
    tpu.vector_store %arg3[%c0_8, %c1, %c0_9, %c0_10], %18 {strides = array<i32>} : memref<1x16x8x64xf32, #tpu.memory_space<vmem>>, vector<1x1x8x64xf32>,
    %c0_11 = arith.constant 0 : index
    %c1_12 = arith.constant 1 : index
    %c0_13 = arith.constant 0 : index
    %c0_14 = arith.constant 0 : index
    %19 = vector.load %arg2[%c0_11, %c1_12, %c0_13, %c0_14] : memref<1x8x8x16xf32, #tpu.memory_space<vmem>>, vector<1x1x8x16xf32>
    %20 = vector.shape_cast %19 : vector<1x1x8x16xf32> to vector<8x16xf32>
    %cst_15 = arith.constant dense<0.000000e+00> : vector<8x64xf32>
    %21 = tpu.matmul %20, %8, %cst_15 {dimension_numbers = #tpu.dot_dimension_numbers<[1], [0], [0], [1], [0, 0, 1, 1], [], []>} : vector<8x16xf32>, vector<16x64xf32>, vector<8x64xf32> -> vector<8x64xf32>
    %c0_16 = arith.constant 0 : index
    %c2 = arith.constant 2 : index
    %c0_17 = arith.constant 0 : index
    %c0_18 = arith.constant 0 : index
    %22 = vector.load %arg3[%c0_16, %c2, %c0_17, %c0_18] : memref<1x16x8x64xf32, #tpu.memory_space<vmem>>, vector<1x1x8x64xf32>
    %23 = vector.shape_cast %22 : vector<1x1x8x64xf32> to vector<8x64xf32>
    %24 = vector.shape_cast %21 : vector<8x64xf32> to vector<1x1x8x64xf32>
    tpu.vector_store %arg3[%c0_16, %c2, %c0_17, %c0_18], %24 {strides = array<i32>} : memref<1x16x8x64xf32, #tpu.memory_space<vmem>>, vector<1x1x8x64xf32>,
    %c0_19 = arith.constant 0 : index
    %c3 = arith.constant 3 : index
    %c0_20 = arith.constant 0 : index
    %c0_21 = arith.constant 0 : index
    %25 = vector.load %arg3[%c0_19, %c3, %c0_20, %c0_21] : memref<1x16x8x64xf32, #tpu.memory_space<vmem>>, vector<1x1x8x64xf32>
    %26 = vector.shape_cast %25 : vector<1x1x8x64xf32> to vector<8x64xf32>
    %27 = vector.shape_cast %9 : vector<8x64xf32> to vector<1x1x8x64xf32>
    tpu.vector_store %arg3[%c0_19, %c3, %c0_20, %c0_21], %27 {strides = array<i32>} : memref<1x16x8x64xf32, #tpu.memory_space<vmem>>, vector<1x1x8x64xf32>,
    %c0_22 = arith.constant 0 : index
    %c2_23 = arith.constant 2 : index
    %c0_24 = arith.constant 0 : index
    %c0_25 = arith.constant 0 : index
    %28 = vector.load %arg2[%c0_22, %c2_23, %c0_24, %c0_25] : memref<1x8x8x16xf32, #tpu.memory_space<vmem>>, vector<1x1x8x16xf32>
    %29 = vector.shape_cast %28 : vector<1x1x8x16xf32> to vector<8x16xf32>
    %cst_26 = arith.constant dense<0.000000e+00> : vector<8x64xf32>
    %30 = tpu.matmul %29, %8, %cst_26 {dimension_numbers = #tpu.dot_dimension_numbers<[1], [0], [0], [1], [0, 0, 1, 1], [], []>} : vector<8x16xf32>, vector<16x64xf32>, vector<8x64xf32> -> vector<8x64xf32>
    %c0_27 = arith.constant 0 : index
    %c4 = arith.constant 4 : index
    %c0_28 = arith.constant 0 : index
    %c0_29 = arith.constant 0 : index
    %31 = vector.load %arg3[%c0_27, %c4, %c0_28, %c0_29] : memref<1x16x8x64xf32, #tpu.memory_space<vmem>>, vector<1x1x8x64xf32>
    %32 = vector.shape_cast %31 : vector<1x1x8x64xf32> to vector<8x64xf32>
    %33 = vector.shape_cast %30 : vector<8x64xf32> to vector<1x1x8x64xf32>
    tpu.vector_store %arg3[%c0_27, %c4, %c0_28, %c0_29], %33 {strides = array<i32>} : memref<1x16x8x64xf32, #tpu.memory_space<vmem>>, vector<1x1x8x64xf32>,
    %c0_30 = arith.constant 0 : index
    %c5 = arith.constant 5 : index
    %c0_31 = arith.constant 0 : index
    %c0_32 = arith.constant 0 : index
    %34 = vector.load %arg3[%c0_30, %c5, %c0_31, %c0_32] : memref<1x16x8x64xf32, #tpu.memory_space<vmem>>, vector<1x1x8x64xf32>
    %35 = vector.shape_cast %34 : vector<1x1x8x64xf32> to vector<8x64xf32>
    %36 = vector.shape_cast %9 : vector<8x64xf32> to vector<1x1x8x64xf32>
    tpu.vector_store %arg3[%c0_30, %c5, %c0_31, %c0_32], %36 {strides = array<i32>} : memref<1x16x8x64xf32, #tpu.memory_space<vmem>>, vector<1x1x8x64xf32>,
    %c0_33 = arith.constant 0 : index
    %c3_34 = arith.constant 3 : index
    %c0_35 = arith.constant 0 : index
    %c0_36 = arith.constant 0 : index
    %37 = vector.load %arg2[%c0_33, %c3_34, %c0_35, %c0_36] : memref<1x8x8x16xf32, #tpu.memory_space<vmem>>, vector<1x1x8x16xf32>
    %38 = vector.shape_cast %37 : vector<1x1x8x16xf32> to vector<8x16xf32>
    %cst_37 = arith.constant dense<0.000000e+00> : vector<8x64xf32>
    %39 = tpu.matmul %38, %8, %cst_37 {dimension_numbers = #tpu.dot_dimension_numbers<[1], [0], [0], [1], [0, 0, 1, 1], [], []>} : vector<8x16xf32>, vector<16x64xf32>, vector<8x64xf32> -> vector<8x64xf32>
    %c0_38 = arith.constant 0 : index
    %c6 = arith.constant 6 : index
    %c0_39 = arith.constant 0 : index
    %c0_40 = arith.constant 0 : index
    %40 = vector.load %arg3[%c0_38, %c6, %c0_39, %c0_40] : memref<1x16x8x64xf32, #tpu.memory_space<vmem>>, vector<1x1x8x64xf32>
    %41 = vector.shape_cast %40 : vector<1x1x8x64xf32> to vector<8x64xf32>
    %42 = vector.shape_cast %39 : vector<8x64xf32> to vector<1x1x8x64xf32>
    tpu.vector_store %arg3[%c0_38, %c6, %c0_39, %c0_40], %42 {strides = array<i32>} : memref<1x16x8x64xf32, #tpu.memory_space<vmem>>, vector<1x1x8x64xf32>,
    %c0_41 = arith.constant 0 : index
    %c7 = arith.constant 7 : index
    %c0_42 = arith.constant 0 : index
    %c0_43 = arith.constant 0 : index
    %43 = vector.load %arg3[%c0_41, %c7, %c0_42, %c0_43] : memref<1x16x8x64xf32, #tpu.memory_space<vmem>>, vector<1x1x8x64xf32>
    %44 = vector.shape_cast %43 : vector<1x1x8x64xf32> to vector<8x64xf32>
    %45 = vector.shape_cast %9 : vector<8x64xf32> to vector<1x1x8x64xf32>
    tpu.vector_store %arg3[%c0_41, %c7, %c0_42, %c0_43], %45 {strides = array<i32>} : memref<1x16x8x64xf32, #tpu.memory_space<vmem>>, vector<1x1x8x64xf32>,
    %c0_44 = arith.constant 0 : index
    %c4_45 = arith.constant 4 : index
    %c0_46 = arith.constant 0 : index
    %c0_47 = arith.constant 0 : index
    %46 = vector.load %arg2[%c0_44, %c4_45, %c0_46, %c0_47] : memref<1x8x8x16xf32, #tpu.memory_space<vmem>>, vector<1x1x8x16xf32>
    %47 = vector.shape_cast %46 : vector<1x1x8x16xf32> to vector<8x16xf32>
    %cst_48 = arith.constant dense<0.000000e+00> : vector<8x64xf32>
    %48 = tpu.matmul %47, %8, %cst_48 {dimension_numbers = #tpu.dot_dimension_numbers<[1], [0], [0], [1], [0, 0, 1, 1], [], []>} : vector<8x16xf32>, vector<16x64xf32>, vector<8x64xf32> -> vector<8x64xf32>
    %c0_49 = arith.constant 0 : index
    %c8 = arith.constant 8 : index
    %c0_50 = arith.constant 0 : index
    %c0_51 = arith.constant 0 : index
    %49 = vector.load %arg3[%c0_49, %c8, %c0_50, %c0_51] : memref<1x16x8x64xf32, #tpu.memory_space<vmem>>, vector<1x1x8x64xf32>
    %50 = vector.shape_cast %49 : vector<1x1x8x64xf32> to vector<8x64xf32>
    %51 = vector.shape_cast %48 : vector<8x64xf32> to vector<1x1x8x64xf32>
    tpu.vector_store %arg3[%c0_49, %c8, %c0_50, %c0_51], %51 {strides = array<i32>} : memref<1x16x8x64xf32, #tpu.memory_space<vmem>>, vector<1x1x8x64xf32>,
    %c0_52 = arith.constant 0 : index
    %c9 = arith.constant 9 : index
    %c0_53 = arith.constant 0 : index
    %c0_54 = arith.constant 0 : index
    %52 = vector.load %arg3[%c0_52, %c9, %c0_53, %c0_54] : memref<1x16x8x64xf32, #tpu.memory_space<vmem>>, vector<1x1x8x64xf32>
    %53 = vector.shape_cast %52 : vector<1x1x8x64xf32> to vector<8x64xf32>
    %54 = vector.shape_cast %9 : vector<8x64xf32> to vector<1x1x8x64xf32>
    tpu.vector_store %arg3[%c0_52, %c9, %c0_53, %c0_54], %54 {strides = array<i32>} : memref<1x16x8x64xf32, #tpu.memory_space<vmem>>, vector<1x1x8x64xf32>,
    %c0_55 = arith.constant 0 : index
    %c5_56 = arith.constant 5 : index
    %c0_57 = arith.constant 0 : index
    %c0_58 = arith.constant 0 : index
    %55 = vector.load %arg2[%c0_55, %c5_56, %c0_57, %c0_58] : memref<1x8x8x16xf32, #tpu.memory_space<vmem>>, vector<1x1x8x16xf32>
    %56 = vector.shape_cast %55 : vector<1x1x8x16xf32> to vector<8x16xf32>
    %cst_59 = arith.constant dense<0.000000e+00> : vector<8x64xf32>
    %57 = tpu.matmul %56, %8, %cst_59 {dimension_numbers = #tpu.dot_dimension_numbers<[1], [0], [0], [1], [0, 0, 1, 1], [], []>} : vector<8x16xf32>, vector<16x64xf32>, vector<8x64xf32> -> vector<8x64xf32>
    %c0_60 = arith.constant 0 : index
    %c10 = arith.constant 10 : index
    %c0_61 = arith.constant 0 : index
    %c0_62 = arith.constant 0 : index
    %58 = vector.load %arg3[%c0_60, %c10, %c0_61, %c0_62] : memref<1x16x8x64xf32, #tpu.memory_space<vmem>>, vector<1x1x8x64xf32>
    %59 = vector.shape_cast %58 : vector<1x1x8x64xf32> to vector<8x64xf32>
    %60 = vector.shape_cast %57 : vector<8x64xf32> to vector<1x1x8x64xf32>
    tpu.vector_store %arg3[%c0_60, %c10, %c0_61, %c0_62], %60 {strides = array<i32>} : memref<1x16x8x64xf32, #tpu.memory_space<vmem>>, vector<1x1x8x64xf32>,
    %c0_63 = arith.constant 0 : index
    %c11 = arith.constant 11 : index
    %c0_64 = arith.constant 0 : index
    %c0_65 = arith.constant 0 : index
    %61 = vector.load %arg3[%c0_63, %c11, %c0_64, %c0_65] : memref<1x16x8x64xf32, #tpu.memory_space<vmem>>, vector<1x1x8x64xf32>
    %62 = vector.shape_cast %61 : vector<1x1x8x64xf32> to vector<8x64xf32>
    %63 = vector.shape_cast %9 : vector<8x64xf32> to vector<1x1x8x64xf32>
    tpu.vector_store %arg3[%c0_63, %c11, %c0_64, %c0_65], %63 {strides = array<i32>} : memref<1x16x8x64xf32, #tpu.memory_space<vmem>>, vector<1x1x8x64xf32>,
    %c0_66 = arith.constant 0 : index
    %c6_67 = arith.constant 6 : index
    %c0_68 = arith.constant 0 : index
    %c0_69 = arith.constant 0 : index
    %64 = vector.load %arg2[%c0_66, %c6_67, %c0_68, %c0_69] : memref<1x8x8x16xf32, #tpu.memory_space<vmem>>, vector<1x1x8x16xf32>
    %65 = vector.shape_cast %64 : vector<1x1x8x16xf32> to vector<8x16xf32>
    %cst_70 = arith.constant dense<0.000000e+00> : vector<8x64xf32>
    %66 = tpu.matmul %65, %8, %cst_70 {dimension_numbers = #tpu.dot_dimension_numbers<[1], [0], [0], [1], [0, 0, 1, 1], [], []>} : vector<8x16xf32>, vector<16x64xf32>, vector<8x64xf32> -> vector<8x64xf32>
    %c0_71 = arith.constant 0 : index
    %c12 = arith.constant 12 : index
    %c0_72 = arith.constant 0 : index
    %c0_73 = arith.constant 0 : index
    %67 = vector.load %arg3[%c0_71, %c12, %c0_72, %c0_73] : memref<1x16x8x64xf32, #tpu.memory_space<vmem>>, vector<1x1x8x64xf32>
    %68 = vector.shape_cast %67 : vector<1x1x8x64xf32> to vector<8x64xf32>
    %69 = vector.shape_cast %66 : vector<8x64xf32> to vector<1x1x8x64xf32>
    tpu.vector_store %arg3[%c0_71, %c12, %c0_72, %c0_73], %69 {strides = array<i32>} : memref<1x16x8x64xf32, #tpu.memory_space<vmem>>, vector<1x1x8x64xf32>,
    %c0_74 = arith.constant 0 : index
    %c13 = arith.constant 13 : index
    %c0_75 = arith.constant 0 : index
    %c0_76 = arith.constant 0 : index
    %70 = vector.load %arg3[%c0_74, %c13, %c0_75, %c0_76] : memref<1x16x8x64xf32, #tpu.memory_space<vmem>>, vector<1x1x8x64xf32>
    %71 = vector.shape_cast %70 : vector<1x1x8x64xf32> to vector<8x64xf32>
    %72 = vector.shape_cast %9 : vector<8x64xf32> to vector<1x1x8x64xf32>
    tpu.vector_store %arg3[%c0_74, %c13, %c0_75, %c0_76], %72 {strides = array<i32>} : memref<1x16x8x64xf32, #tpu.memory_space<vmem>>, vector<1x1x8x64xf32>,
    %c0_77 = arith.constant 0 : index
    %c7_78 = arith.constant 7 : index
    %c0_79 = arith.constant 0 : index
    %c0_80 = arith.constant 0 : index
    %73 = vector.load %arg2[%c0_77, %c7_78, %c0_79, %c0_80] : memref<1x8x8x16xf32, #tpu.memory_space<vmem>>, vector<1x1x8x16xf32>
    %74 = vector.shape_cast %73 : vector<1x1x8x16xf32> to vector<8x16xf32>
    %cst_81 = arith.constant dense<0.000000e+00> : vector<8x64xf32>
    %75 = tpu.matmul %74, %8, %cst_81 {dimension_numbers = #tpu.dot_dimension_numbers<[1], [0], [0], [1], [0, 0, 1, 1], [], []>} : vector<8x16xf32>, vector<16x64xf32>, vector<8x64xf32> -> vector<8x64xf32>
    %c0_82 = arith.constant 0 : index
    %c14 = arith.constant 14 : index
    %c0_83 = arith.constant 0 : index
    %c0_84 = arith.constant 0 : index
    %76 = vector.load %arg3[%c0_82, %c14, %c0_83, %c0_84] : memref<1x16x8x64xf32, #tpu.memory_space<vmem>>, vector<1x1x8x64xf32>
    %77 = vector.shape_cast %76 : vector<1x1x8x64xf32> to vector<8x64xf32>
    %78 = vector.shape_cast %75 : vector<8x64xf32> to vector<1x1x8x64xf32>
    tpu.vector_store %arg3[%c0_82, %c14, %c0_83, %c0_84], %78 {strides = array<i32>} : memref<1x16x8x64xf32, #tpu.memory_space<vmem>>, vector<1x1x8x64xf32>,
    %c0_85 = arith.constant 0 : index
    %c15 = arith.constant 15 : index
    %c0_86 = arith.constant 0 : index
    %c0_87 = arith.constant 0 : index
    %79 = vector.load %arg3[%c0_85, %c15, %c0_86, %c0_87] : memref<1x16x8x64xf32, #tpu.memory_space<vmem>>, vector<1x1x8x64xf32>
    %80 = vector.shape_cast %79 : vector<1x1x8x64xf32> to vector<8x64xf32>
    %81 = vector.shape_cast %9 : vector<8x64xf32> to vector<1x1x8x64xf32>
    tpu.vector_store %arg3[%c0_85, %c15, %c0_86, %c0_87], %81 {strides = array<i32>} : memref<1x16x8x64xf32, #tpu.memory_space<vmem>>, vector<1x1x8x64xf32>,
    return
  }
  func.func @transform_0(%arg0: i32, %arg1: i32) -> (i32, i32, i32, i32) {
    %c0_i32 = arith.constant 0 : i32
    %c0_i32_0 = arith.constant 0 : i32
    %c0_i32_1 = arith.constant 0 : i32
    return %arg0, %arg1, %c0_i32, %c0_i32_0 : i32, i32, i32, i32
  }
  func.func @transform_1(%arg0: i32, %arg1: i32) -> (i32, i32, i32, i32) {
    %c0_i32 = arith.constant 0 : i32
    %c0_i32_0 = arith.constant 0 : i32
    %c0_i32_1 = arith.constant 0 : i32
    return %arg0, %arg1, %c0_i32, %c0_i32_0 : i32, i32, i32, i32
  }
}

</mosaic_0001>

<llo_original>
// kernel: tpu_custom_call.1
$region0: #{tpu_custom_call.1}
  #allocation0 [shape = 'u32[]', space=smem, size = 0x4, offset = 0x4, fixed_abs, tag = 'smem constant byte address 0x4 - core index']
  #allocation1 [shape = 'u32[144,128]{1,0:T(1,128)}', space=vmem, size = 0x12000, scoped, tag = 'internal scratch']
  %s0 = inlined_call_operand.hbm [shape: f32[8,8,8,16], index: 0, kind: input, shape index: {}]
  %s1 = inlined_call_operand.hbm [shape: f32[8,16,8,64], index: 1, kind: output, shape index: {}]
  %s2 = sld [smem:[#allocation0]]
  $region41: #{tpu_custom_call.1} parent=0
    _
  %s4 = ssub.s32 1, %s2
  %s5 = scalar_select 0, %s4, %s2
  $region1: #{tpu_custom_call.1} parent=0
    #allocation2 [shape = 'u8[65536]{0}', space=vmem, size = 0x10000, scoped, tag = 'input window, operand 0']
    #allocation3 [shape = 's32[2]{0}', space=sflag, size = 0x8, scoped, tag = 'scoped memory for tpu_custom_call.1']
    #allocation4 [shape = 's32[2]{0}', space=sflag, size = 0x8, scoped, tag = 'scoped memory for tpu_custom_call.1']
    #allocation5 [shape = 'u8[131072]{0}', space=vmem, size = 0x20000, scoped, tag = 'output window, operand 0']
    %6 = vsyncpa [#allocation3], 0
    %s7 = scalar_lea.sflag [#allocation3], 1
    %8 = vsyncpa %s7, 0
    %9 = vsyncpa [#allocation4], 0
    %s10 = scalar_lea.sflag [#allocation4], 1
    %11 = vsyncpa %s10, 0
    loop: start=0, step=1, limit=10
    $region2: #{tpu_custom_call.1} parent=1 // loop_pre_header
      _
    $region3: #{tpu_custom_call.1} parent=1 // loop_header
      %s13 = sphi 0, %s17
      %p14 = scmp.ge.s32.totalorder %s13, 10
      %s20 = sphi 0, %s32
      %s21 = sphi 0, %s28
      %s22 = sphi 0, %s20
      %s23 = sphi 0, %s21
      %s24 = sphi 0, %s22
      %s25 = sphi 0, %s23
      %s37 = sphi 0, %s39
      %s40 = sphi 0, %s37
      %s41 = sphi 0, %s40
      %s57 = sphi 0, %s41
      %s65 = sphi 0, %s67
      %s68 = sphi 0, %s65
      %s69 = sphi 0, %s68
      %s85 = sphi 0, %s69
    $region4: #{tpu_custom_call.1} parent=1 // loop_header_branch
      %16 = sbr.rel (%p14) target = $region8
    $region5: #{tpu_custom_call.1} parent=1 // loop_body
      %s18 = ssub.s32 %s13, 1
      %s19 = ssub.s32 %s13, 2
      %s26 = sadd.s32 1, %s21
      %p27 = scmp.ge.s32.totalorder %s26, 1
      %s28 = scalar_select %p27, 0, %s26
      %s29 = sadd.s32 1, %s20
      %s30 = scalar_select %p27, %s29, %s20
      %p31 = scmp.ge.s32.totalorder %s30, 8
      %s32 = scalar_select %p31, 0, %s30
      %s33 = ssub.s32 %s20, %s32
      %s34 = ssub.s32 %s21, %s28
      %s35 = sor.u32 %s33, %s34
      %p36 = scmp.eq.s32.totalorder %s35, 0
      %s38 = sadd.s32 %s37, 1
      %s39 = scalar_select %p36, %s37, %s38
      %p42 = pneg %p36
      %p43 = scmp.eq.s32.totalorder %s13, 7
      %p44 = por %p42, %p43
      %p45 = scmp.ne.s32.totalorder %s37, %s40
      %p46 = scmp.eq.s32.totalorder %s13, 0
      %p47 = por %p45, %p46
      %p48 = scmp.ne.s32.totalorder %s37, %s40
      %p49 = scmp.eq.s32.totalorder %s18, 7
      %p50 = por %p48, %p49
      %p51 = scmp.ne.s32.totalorder %s40, %s41
      %p52 = scmp.eq.s32.totalorder %s18, 0
      %p53 = por %p51, %p52
      %p54 = scmp.ne.s32.totalorder %s40, %s41
      %p55 = scmp.eq.s32.totalorder %s19, 7
      %p56 = por %p54, %p55
      %p58 = scmp.ne.s32.totalorder %s41, %s57
      %p59 = scmp.eq.s32.totalorder %s19, 0
      %p60 = por %p58, %p59
      %s61 = ssub.s32 %s20, %s32
      %s62 = ssub.s32 %s21, %s28
      %s63 = sor.u32 %s61, %s62
      %p64 = scmp.eq.s32.totalorder %s63, 0
      %s66 = sadd.s32 %s65, 1
      %s67 = scalar_select %p64, %s65, %s66
      %p70 = pneg %p64
      %p71 = scmp.eq.s32.totalorder %s13, 7
      %p72 = por %p70, %p71
      %p73 = scmp.ne.s32.totalorder %s65, %s68
      %p74 = scmp.eq.s32.totalorder %s13, 0
      %p75 = por %p73, %p74
      %p76 = scmp.ne.s32.totalorder %s65, %s68
      %p77 = scmp.eq.s32.totalorder %s18, 7
      %p78 = por %p76, %p77
      %p79 = scmp.ne.s32.totalorder %s68, %s69
      %p80 = scmp.eq.s32.totalorder %s18, 0
      %p81 = por %p79, %p80
      %p82 = scmp.ne.s32.totalorder %s68, %s69
      %p83 = scmp.eq.s32.totalorder %s19, 7
      %p84 = por %p82, %p83
      %p86 = scmp.ne.s32.totalorder %s69, %s85
      %p87 = scmp.eq.s32.totalorder %s19, 0
      %p88 = por %p86, %p87
      %p89 = scmp.le.s32.totalorder 1, %s13
      %p90 = scmp.lt.s32.totalorder %s13, 9
      %p91 = pnand %p89, %p90
      %p92 = pneg %p91
      // Predicated region
      $region9: #{tpu_custom_call.1} parent=5 // pred_check
        _
      $region10: #{tpu_custom_call.1} parent=5 // pred_check_branch
        %94 = sbr.rel (%p91) target = $region12
      $region11: #{tpu_custom_call.1} parent=5 // pred_region
        %s95 = ssub.s32 %s13, 1
      $region12: #{tpu_custom_call.1} parent=5 // pred_fallthru
        _
      %p96 = scmp.lt.s32.totalorder %s13, 8
      // Predicated region
      $region13: #{tpu_custom_call.1} parent=5 // pred_check
        %p97 = pneg %p96
      $region14: #{tpu_custom_call.1} parent=5 // pred_check_branch
        %99 = sbr.rel (%p97) target = $region16
      $region15: #{tpu_custom_call.1} parent=5 // pred_region
        // Predicated region
        $region17: #{tpu_custom_call.1} parent=15 // pred_check
          %p100 = pneg %p47
        $region18: #{tpu_custom_call.1} parent=15 // pred_check_branch
          %102 = sbr.rel (%p100) target = $region20
        $region19: #{tpu_custom_call.1} parent=15 // pred_region
          %s103 = sand.u32 %s37, 1
          %s104 = scalar_lea.sflag [#allocation3], %s103
          %s105 = sand.u32 %s37, 1
          %s106 = smul.addr %s105, 64
          %s107 = scalar_lea.vmem [#allocation2], %s106
          %s108 = smul.u32 8, %s21
          %s110 = ssub.s32 1024, 1024
          %111 = vsyncadd %s104, %s110
          %s112 = smul.addr %s20, 8
          %s113 = sadd.s32 %s108, %s112
          %s114 = smul.addr %s113, 128
          %s115 = scalar_lea.hbm %s0, %s114
          %s116 = sshll.u32 %s107, 4
          %s117 = int_to_ptr.vmem [resolvable:$true] %s116
          %122 = dma.hbm_to_vmem [thread:$0]  %s115, 1024, %s117, %s104, 128, 128, 8
        $region20: #{tpu_custom_call.1} parent=15 // pred_fallthru
          _
      $region16: #{tpu_custom_call.1} parent=5 // pred_fallthru
        _
      %p123 = scmp.le.s32.totalorder 1, %s13
      %p124 = scmp.lt.s32.totalorder %s13, 9
      %p125 = pnand %p123, %p124
      %p126 = pneg %p125
      // Predicated region
      $region21: #{tpu_custom_call.1} parent=5 // pred_check
        _
      $region22: #{tpu_custom_call.1} parent=5 // pred_check_branch
        %128 = sbr.rel (%p125) target = $region24
      $region23: #{tpu_custom_call.1} parent=5 // pred_region
        %s129 = ssub.s32 %s13, 1
        %s130 = sand.u32 %s40, 1
        %s131 = scalar_lea.sflag [#allocation3], %s130
        %s132 = sand.u32 %s40, 1
        %s133 = smul.addr %s132, 64
        %s134 = scalar_lea.vmem [#allocation2], %s133
        // Predicated region
        $region25: #{tpu_custom_call.1} parent=23 // pred_check
          %p135 = pneg %p53
        $region26: #{tpu_custom_call.1} parent=23 // pred_check_branch
          %137 = sbr.rel (%p135) target = $region28
        $region27: #{tpu_custom_call.1} parent=23 // pred_region
          %138 = dma.done %s131, 1024
        $region28: #{tpu_custom_call.1} parent=23 // pred_fallthru
          _
        %s139 = sand.u32 %s40, 1
        %s140 = scalar_lea.sflag [#allocation3], %s139
        %s141 = sand.u32 %s40, 1
        %s142 = smul.addr %s141, 64
        %s143 = scalar_lea.vmem [#allocation2], %s142
        %p144 = pneg %p53
        %p145 = pneg %p50
        %p146 = pneg %p81
        %p147 = pneg %p78
        %s148 = sand.u32 %s68, 1
        %s149 = scalar_lea.sflag [#allocation4], %s148
        %s150 = sand.u32 %s68, 1
        %s151 = smul.addr %s150, 128
        %s152 = scalar_lea.vmem [#allocation5], %s151
        %s153 = smul.u32 8, %s23
        %s154 = smul.u32 16, %s23
        %v155 = vlaneseq
        %v156 = vshrl.u32 %v155, 7
        %v157 = vadd.s32 %v156, 8
        %v158 = vlaneseq
        %v159 = vand.u32 %v158, 127
        %v160 = vmul.u32 %v156, 2
        %v161 = vmul.u32 %v157, 2
        %vm162 = vcmp.eq.s32.totalorder %v159, %v160
        %vm163 = vcmp.eq.s32.totalorder %v159, %v161
        %v164 = vsel %vm162, 1, 0
        %v165 = vsel %vm163, 1, 0
        %v166 = vcvt.s32.f32 %v164
        %v167 = vcvt.s32.f32 %v165
        %v168 = vld [vmem:[%s134] sm:$0xff]
        %vm169 = vcmask 130048
        %v171 = vsel %vm169, %v168, 0
        %173 = vmatprep.subr.mxu0 0.0
        %174 = vmatpush1.msra.mxu0 0.0
        %175 = vmatprep.subr.mxu0 0.0
        %176 = vmatpush1.msra.mxu0 0.0
        %177 = vmatprep.subr.mxu0 0.0
        %178 = vmatpush1.msra.mxu0 0.0
        %179 = vmatprep.subr.mxu0 0.0
        %180 = vmatpush1.msra.mxu0 0.0
        %181 = vmatprep.subr.mxu0 0.0
        %182 = vmatpush1.msra.mxu0 0.0
        %183 = vmatprep.subr.mxu0 0.0
        %184 = vmatpush1.msra.mxu0 0.0
        %185 = vmatprep.subr.mxu0 0.0
        %186 = vmatpush1.msra.mxu0 0.0
        %187 = vmatprep.subr.mxu0 0.0
        %188 = vmatpush1.msra.mxu0 0.0
        %189 = vmatprep.subr.mxu0 0.0
        %190 = vmatpush1.msra.mxu0 0.0
        %191 = vmatprep.subr.mxu0 0.0
        %192 = vmatpush1.msra.mxu0 0.0
        %193 = vmatprep.subr.mxu0 0.0
        %194 = vmatpush1.msra.mxu0 0.0
        %195 = vmatprep.subr.mxu0 0.0
        %196 = vmatpush1.msra.mxu0 0.0
        %197 = vmatprep.subr.mxu0 0.0
        %198 = vmatpush1.msra.mxu0 0.0
        %199 = vmatprep.subr.mxu0 0.0
        %200 = vmatpush1.msra.mxu0 0.0
        %201 = vmatprep.subr.mxu0 0.0
        %202 = vmatpush1.msra.mxu0 %v167
        %203 = vmatprep.subr.mxu0 0.0
        %204 = vmatpush1.msra.mxu0 %v166
        %205 = vmatprep.subr.mxu0 0.0
        %206 = vmatpush2.msra.mxu0 0.0
        %207 = vmatprep.subr.mxu0 0.0
        %208 = vmatpush2.msra.mxu0 0.0
        %209 = vmatprep.subr.mxu0 0.0
        %210 = vmatpush2.msra.mxu0 0.0
        %211 = vmatprep.subr.mxu0 0.0
        %212 = vmatpush2.msra.mxu0 0.0
        %213 = vmatprep.subr.mxu0 0.0
        %214 = vmatpush2.msra.mxu0 0.0
        %215 = vmatprep.subr.mxu0 0.0
        %216 = vmatpush2.msra.mxu0 0.0
        %217 = vmatprep.subr.mxu0 0.0
        %218 = vmatpush2.msra.mxu0 0.0
        %219 = vmatprep.subr.mxu0 0.0
        %220 = vmatpush2.msra.mxu0 0.0
        %221 = vmatprep.subr.mxu0 0.0
        %222 = vmatpush2.msra.mxu0 0.0
        %223 = vmatprep.subr.mxu0 0.0
        %224 = vmatpush2.msra.mxu0 0.0
        %225 = vmatprep.subr.mxu0 0.0
        %226 = vmatpush2.msra.mxu0 0.0
        %227 = vmatprep.subr.mxu0 0.0
        %228 = vmatpush2.msra.mxu0 0.0
        %229 = vmatprep.subr.mxu0 0.0
        %230 = vmatpush2.msra.mxu0 0.0
        %231 = vmatprep.subr.mxu0 0.0
        %232 = vmatpush2.msra.mxu0 0.0
        %233 = vmatprep.subr.mxu0 0.0
        %234 = vmatpush2.msra.mxu0 0.0
        %235 = vmatprep.subr.mxu0 0.0
        %236 = vmatpush2.msra.mxu0 0.0
        %237 = vmatprep.mubr.f32.mxu0 0.0
        %238 = vmatmul.mubr.f32.gmra.mxu0 %v171
        %v239 = vpop.f32.mrf.mxu0
        %v240 = vadd.f32 0.0, %v239
        %v241 = vpop.f32.mrf.mxu0
        %242 = vdwg.mxu0
        %vm243 = vcmask 523264
        %244 = vst.msk [vmem:[%s152] sm:$0xff] %vm243, %v240
        %s245 = scalar_lea.vmem %s152, 8 [#allocation5]
        %246 = vst.msk [vmem:[%s245] sm:$0xff] %vm243, 0.0
        %s247 = scalar_lea.vmem %s134, 8 [#allocation2]
        %v248 = vld [vmem:[%s247] sm:$0xff]
        %v250 = vsel %vm169, %v248, 0
        %252 = vmatprep.subr.mxu0 0.0
        %253 = vmatpush1.msra.mxu0 0.0
        %254 = vmatprep.subr.mxu0 0.0
        %255 = vmatpush1.msra.mxu0 0.0
        %256 = vmatprep.subr.mxu0 0.0
        %257 = vmatpush1.msra.mxu0 0.0
        %258 = vmatprep.subr.mxu0 0.0
        %259 = vmatpush1.msra.mxu0 0.0
        %260 = vmatprep.subr.mxu0 0.0
        %261 = vmatpush1.msra.mxu0 0.0
        %262 = vmatprep.subr.mxu0 0.0
        %263 = vmatpush1.msra.mxu0 0.0
        %264 = vmatprep.subr.mxu0 0.0
        %265 = vmatpush1.msra.mxu0 0.0
        %266 = vmatprep.subr.mxu0 0.0
        %267 = vmatpush1.msra.mxu0 0.0
        %268 = vmatprep.subr.mxu0 0.0
        %269 = vmatpush1.msra.mxu0 0.0
        %270 = vmatprep.subr.mxu0 0.0
        %271 = vmatpush1.msra.mxu0 0.0
        %272 = vmatprep.subr.mxu0 0.0
        %273 = vmatpush1.msra.mxu0 0.0
        %274 = vmatprep.subr.mxu0 0.0
        %275 = vmatpush1.msra.mxu0 0.0
        %276 = vmatprep.subr.mxu0 0.0
        %277 = vmatpush1.msra.mxu0 0.0
        %278 = vmatprep.subr.mxu0 0.0
        %279 = vmatpush1.msra.mxu0 0.0
        %280 = vmatprep.subr.mxu0 0.0
        %281 = vmatpush1.msra.mxu0 %v167
        %282 = vmatprep.subr.mxu0 0.0
        %283 = vmatpush1.msra.mxu0 %v166
        %284 = vmatprep.subr.mxu0 0.0
        %285 = vmatpush2.msra.mxu0 0.0
        %286 = vmatprep.subr.mxu0 0.0
        %287 = vmatpush2.msra.mxu0 0.0
        %288 = vmatprep.subr.mxu0 0.0
        %289 = vmatpush2.msra.mxu0 0.0
        %290 = vmatprep.subr.mxu0 0.0
        %291 = vmatpush2.msra.mxu0 0.0
        %292 = vmatprep.subr.mxu0 0.0
        %293 = vmatpush2.msra.mxu0 0.0
        %294 = vmatprep.subr.mxu0 0.0
        %295 = vmatpush2.msra.mxu0 0.0
        %296 = vmatprep.subr.mxu0 0.0
        %297 = vmatpush2.msra.mxu0 0.0
        %298 = vmatprep.subr.mxu0 0.0
        %299 = vmatpush2.msra.mxu0 0.0
        %300 = vmatprep.subr.mxu0 0.0
        %301 = vmatpush2.msra.mxu0 0.0
        %302 = vmatprep.subr.mxu0 0.0
        %303 = vmatpush2.msra.mxu0 0.0
        %304 = vmatprep.subr.mxu0 0.0
        %305 = vmatpush2.msra.mxu0 0.0
        %306 = vmatprep.subr.mxu0 0.0
        %307 = vmatpush2.msra.mxu0 0.0
        %308 = vmatprep.subr.mxu0 0.0
        %309 = vmatpush2.msra.mxu0 0.0
        %310 = vmatprep.subr.mxu0 0.0
        %311 = vmatpush2.msra.mxu0 0.0
        %312 = vmatprep.subr.mxu0 0.0
        %313 = vmatpush2.msra.mxu0 0.0
        %314 = vmatprep.subr.mxu0 0.0
        %315 = vmatpush2.msra.mxu0 0.0
        %316 = vmatprep.mubr.f32.mxu0 0.0
        %317 = vmatmul.mubr.f32.gmra.mxu0 %v250
        %v318 = vpop.f32.mrf.mxu0
        %v319 = vadd.f32 0.0, %v318
        %v320 = vpop.f32.mrf.mxu0
        %321 = vdwg.mxu0
        %s322 = scalar_lea.vmem %s152, 16 [#allocation5]
        %323 = vst.msk [vmem:[%s322] sm:$0xff] %vm243, %v319
        %s324 = scalar_lea.vmem %s152, 24 [#allocation5]
        %325 = vst.msk [vmem:[%s324] sm:$0xff] %vm243, 0.0
        %s326 = scalar_lea.vmem %s134, 16 [#allocation2]
        %v327 = vld [vmem:[%s326] sm:$0xff]
        %v329 = vsel %vm169, %v327, 0
        %331 = vmatprep.subr.mxu0 0.0
        %332 = vmatpush1.msra.mxu0 0.0
        %333 = vmatprep.subr.mxu0 0.0
        %334 = vmatpush1.msra.mxu0 0.0
        %335 = vmatprep.subr.mxu0 0.0
        %336 = vmatpush1.msra.mxu0 0.0
        %337 = vmatprep.subr.mxu0 0.0
        %338 = vmatpush1.msra.mxu0 0.0
        %339 = vmatprep.subr.mxu0 0.0
        %340 = vmatpush1.msra.mxu0 0.0
        %341 = vmatprep.subr.mxu0 0.0
        %342 = vmatpush1.msra.mxu0 0.0
        %343 = vmatprep.subr.mxu0 0.0
        %344 = vmatpush1.msra.mxu0 0.0
        %345 = vmatprep.subr.mxu0 0.0
        %346 = vmatpush1.msra.mxu0 0.0
        %347 = vmatprep.subr.mxu0 0.0
        %348 = vmatpush1.msra.mxu0 0.0
        %349 = vmatprep.subr.mxu0 0.0
        %350 = vmatpush1.msra.mxu0 0.0
        %351 = vmatprep.subr.mxu0 0.0
        %352 = vmatpush1.msra.mxu0 0.0
        %353 = vmatprep.subr.mxu0 0.0
        %354 = vmatpush1.msra.mxu0 0.0
        %355 = vmatprep.subr.mxu0 0.0
        %356 = vmatpush1.msra.mxu0 0.0
        %357 = vmatprep.subr.mxu0 0.0
        %358 = vmatpush1.msra.mxu0 0.0
        %359 = vmatprep.subr.mxu0 0.0
        %360 = vmatpush1.msra.mxu0 %v167
        %361 = vmatprep.subr.mxu0 0.0
        %362 = vmatpush1.msra.mxu0 %v166
        %363 = vmatprep.subr.mxu0 0.0
        %364 = vmatpush2.msra.mxu0 0.0
        %365 = vmatprep.subr.mxu0 0.0
        %366 = vmatpush2.msra.mxu0 0.0
        %367 = vmatprep.subr.mxu0 0.0
        %368 = vmatpush2.msra.mxu0 0.0
        %369 = vmatprep.subr.mxu0 0.0
        %370 = vmatpush2.msra.mxu0 0.0
        %371 = vmatprep.subr.mxu0 0.0
        %372 = vmatpush2.msra.mxu0 0.0
        %373 = vmatprep.subr.mxu0 0.0
        %374 = vmatpush2.msra.mxu0 0.0
        %375 = vmatprep.subr.mxu0 0.0
        %376 = vmatpush2.msra.mxu0 0.0
        %377 = vmatprep.subr.mxu0 0.0
        %378 = vmatpush2.msra.mxu0 0.0
        %379 = vmatprep.subr.mxu0 0.0
        %380 = vmatpush2.msra.mxu0 0.0
        %381 = vmatprep.subr.mxu0 0.0
        %382 = vmatpush2.msra.mxu0 0.0
        %383 = vmatprep.subr.mxu0 0.0
        %384 = vmatpush2.msra.mxu0 0.0
        %385 = vmatprep.subr.mxu0 0.0
        %386 = vmatpush2.msra.mxu0 0.0
        %387 = vmatprep.subr.mxu0 0.0
        %388 = vmatpush2.msra.mxu0 0.0
        %389 = vmatprep.subr.mxu0 0.0
        %390 = vmatpush2.msra.mxu0 0.0
        %391 = vmatprep.subr.mxu0 0.0
        %392 = vmatpush2.msra.mxu0 0.0
        %393 = vmatprep.subr.mxu0 0.0
        %394 = vmatpush2.msra.mxu0 0.0
        %395 = vmatprep.mubr.f32.mxu0 0.0
        %396 = vmatmul.mubr.f32.gmra.mxu0 %v329
        %v397 = vpop.f32.mrf.mxu0
        %v398 = vadd.f32 0.0, %v397
        %v399 = vpop.f32.mrf.mxu0
        %400 = vdwg.mxu0
        %s401 = scalar_lea.vmem %s152, 32 [#allocation5]
        %402 = vst.msk [vmem:[%s401] sm:$0xff] %vm243, %v398
        %s403 = scalar_lea.vmem %s152, 40 [#allocation5]
        %404 = vst.msk [vmem:[%s403] sm:$0xff] %vm243, 0.0
        %s405 = scalar_lea.vmem %s134, 24 [#allocation2]
        %v406 = vld [vmem:[%s405] sm:$0xff]
        %v408 = vsel %vm169, %v406, 0
        %410 = vmatprep.subr.mxu0 0.0
        %411 = vmatpush1.msra.mxu0 0.0
        %412 = vmatprep.subr.mxu0 0.0
        %413 = vmatpush1.msra.mxu0 0.0
        %414 = vmatprep.subr.mxu0 0.0
        %415 = vmatpush1.msra.mxu0 0.0
        %416 = vmatprep.subr.mxu0 0.0
        %417 = vmatpush1.msra.mxu0 0.0
        %418 = vmatprep.subr.mxu0 0.0
        %419 = vmatpush1.msra.mxu0 0.0
        %420 = vmatprep.subr.mxu0 0.0
        %421 = vmatpush1.msra.mxu0 0.0
        %422 = vmatprep.subr.mxu0 0.0
        %423 = vmatpush1.msra.mxu0 0.0
        %424 = vmatprep.subr.mxu0 0.0
        %425 = vmatpush1.msra.mxu0 0.0
        %426 = vmatprep.subr.mxu0 0.0
        %427 = vmatpush1.msra.mxu0 0.0
        %428 = vmatprep.subr.mxu0 0.0
        %429 = vmatpush1.msra.mxu0 0.0
        %430 = vmatprep.subr.mxu0 0.0
        %431 = vmatpush1.msra.mxu0 0.0
        %432 = vmatprep.subr.mxu0 0.0
        %433 = vmatpush1.msra.mxu0 0.0
        %434 = vmatprep.subr.mxu0 0.0
        %435 = vmatpush1.msra.mxu0 0.0
        %436 = vmatprep.subr.mxu0 0.0
        %437 = vmatpush1.msra.mxu0 0.0
        %438 = vmatprep.subr.mxu0 0.0
        %439 = vmatpush1.msra.mxu0 %v167
        %440 = vmatprep.subr.mxu0 0.0
        %441 = vmatpush1.msra.mxu0 %v166
        %442 = vmatprep.subr.mxu0 0.0
        %443 = vmatpush2.msra.mxu0 0.0
        %444 = vmatprep.subr.mxu0 0.0
        %445 = vmatpush2.msra.mxu0 0.0
        %446 = vmatprep.subr.mxu0 0.0
        %447 = vmatpush2.msra.mxu0 0.0
        %448 = vmatprep.subr.mxu0 0.0
        %449 = vmatpush2.msra.mxu0 0.0
        %450 = vmatprep.subr.mxu0 0.0
        %451 = vmatpush2.msra.mxu0 0.0
        %452 = vmatprep.subr.mxu0 0.0
        %453 = vmatpush2.msra.mxu0 0.0
        %454 = vmatprep.subr.mxu0 0.0
        %455 = vmatpush2.msra.mxu0 0.0
        %456 = vmatprep.subr.mxu0 0.0
        %457 = vmatpush2.msra.mxu0 0.0
        %458 = vmatprep.subr.mxu0 0.0
        %459 = vmatpush2.msra.mxu0 0.0
        %460 = vmatprep.subr.mxu0 0.0
        %461 = vmatpush2.msra.mxu0 0.0
        %462 = vmatprep.subr.mxu0 0.0
        %463 = vmatpush2.msra.mxu0 0.0
        %464 = vmatprep.subr.mxu0 0.0
        %465 = vmatpush2.msra.mxu0 0.0
        %466 = vmatprep.subr.mxu0 0.0
        %467 = vmatpush2.msra.mxu0 0.0
        %468 = vmatprep.subr.mxu0 0.0
        %469 = vmatpush2.msra.mxu0 0.0
        %470 = vmatprep.subr.mxu0 0.0
        %471 = vmatpush2.msra.mxu0 0.0
        %472 = vmatprep.subr.mxu0 0.0
        %473 = vmatpush2.msra.mxu0 0.0
        %474 = vmatprep.mubr.f32.mxu0 0.0
        %475 = vmatmul.mubr.f32.gmra.mxu0 %v408
        %v476 = vpop.f32.mrf.mxu0
        %v477 = vadd.f32 0.0, %v476
        %v478 = vpop.f32.mrf.mxu0
        %479 = vdwg.mxu0
        %s480 = scalar_lea.vmem %s152, 48 [#allocation5]
        %481 = vst.msk [vmem:[%s480] sm:$0xff] %vm243, %v477
        %s482 = scalar_lea.vmem %s152, 56 [#allocation5]
        %483 = vst.msk [vmem:[%s482] sm:$0xff] %vm243, 0.0
        %s484 = scalar_lea.vmem %s134, 32 [#allocation2]
        %v485 = vld [vmem:[%s484] sm:$0xff]
        %v487 = vsel %vm169, %v485, 0
        %489 = vmatprep.subr.mxu0 0.0
        %490 = vmatpush1.msra.mxu0 0.0
        %491 = vmatprep.subr.mxu0 0.0
        %492 = vmatpush1.msra.mxu0 0.0
        %493 = vmatprep.subr.mxu0 0.0
        %494 = vmatpush1.msra.mxu0 0.0
        %495 = vmatprep.subr.mxu0 0.0
        %496 = vmatpush1.msra.mxu0 0.0
        %497 = vmatprep.subr.mxu0 0.0
        %498 = vmatpush1.msra.mxu0 0.0
        %499 = vmatprep.subr.mxu0 0.0
        %500 = vmatpush1.msra.mxu0 0.0
        %501 = vmatprep.subr.mxu0 0.0
        %502 = vmatpush1.msra.mxu0 0.0
        %503 = vmatprep.subr.mxu0 0.0
        %504 = vmatpush1.msra.mxu0 0.0
        %505 = vmatprep.subr.mxu0 0.0
        %506 = vmatpush1.msra.mxu0 0.0
        %507 = vmatprep.subr.mxu0 0.0
        %508 = vmatpush1.msra.mxu0 0.0
        %509 = vmatprep.subr.mxu0 0.0
        %510 = vmatpush1.msra.mxu0 0.0
        %511 = vmatprep.subr.mxu0 0.0
        %512 = vmatpush1.msra.mxu0 0.0
        %513 = vmatprep.subr.mxu0 0.0
        %514 = vmatpush1.msra.mxu0 0.0
        %515 = vmatprep.subr.mxu0 0.0
        %516 = vmatpush1.msra.mxu0 0.0
        %517 = vmatprep.subr.mxu0 0.0
        %518 = vmatpush1.msra.mxu0 %v167
        %519 = vmatprep.subr.mxu0 0.0
        %520 = vmatpush1.msra.mxu0 %v166
        %521 = vmatprep.subr.mxu0 0.0
        %522 = vmatpush2.msra.mxu0 0.0
        %523 = vmatprep.subr.mxu0 0.0
        %524 = vmatpush2.msra.mxu0 0.0
        %525 = vmatprep.subr.mxu0 0.0
        %526 = vmatpush2.msra.mxu0 0.0
        %527 = vmatprep.subr.mxu0 0.0
        %528 = vmatpush2.msra.mxu0 0.0
        %529 = vmatprep.subr.mxu0 0.0
        %530 = vmatpush2.msra.mxu0 0.0
        %531 = vmatprep.subr.mxu0 0.0
        %532 = vmatpush2.msra.mxu0 0.0
        %533 = vmatprep.subr.mxu0 0.0
        %534 = vmatpush2.msra.mxu0 0.0
        %535 = vmatprep.subr.mxu0 0.0
        %536 = vmatpush2.msra.mxu0 0.0
        %537 = vmatprep.subr.mxu0 0.0
        %538 = vmatpush2.msra.mxu0 0.0
        %539 = vmatprep.subr.mxu0 0.0
        %540 = vmatpush2.msra.mxu0 0.0
        %541 = vmatprep.subr.mxu0 0.0
        %542 = vmatpush2.msra.mxu0 0.0
        %543 = vmatprep.subr.mxu0 0.0
        %544 = vmatpush2.msra.mxu0 0.0
        %545 = vmatprep.subr.mxu0 0.0
        %546 = vmatpush2.msra.mxu0 0.0
        %547 = vmatprep.subr.mxu0 0.0
        %548 = vmatpush2.msra.mxu0 0.0
        %549 = vmatprep.subr.mxu0 0.0
        %550 = vmatpush2.msra.mxu0 0.0
        %551 = vmatprep.subr.mxu0 0.0
        %552 = vmatpush2.msra.mxu0 0.0
        %553 = vmatprep.mubr.f32.mxu0 0.0
        %554 = vmatmul.mubr.f32.gmra.mxu0 %v487
        %v555 = vpop.f32.mrf.mxu0
        %v556 = vadd.f32 0.0, %v555
        %v557 = vpop.f32.mrf.mxu0
        %558 = vdwg.mxu0
        %s559 = scalar_lea.vmem %s152, 64 [#allocation5]
        %560 = vst.msk [vmem:[%s559] sm:$0xff] %vm243, %v556
        %s561 = scalar_lea.vmem %s152, 72 [#allocation5]
        %562 = vst.msk [vmem:[%s561] sm:$0xff] %vm243, 0.0
        %s563 = scalar_lea.vmem %s134, 40 [#allocation2]
        %v564 = vld [vmem:[%s563] sm:$0xff]
        %v566 = vsel %vm169, %v564, 0
        %568 = vmatprep.subr.mxu0 0.0
        %569 = vmatpush1.msra.mxu0 0.0
        %570 = vmatprep.subr.mxu0 0.0
        %571 = vmatpush1.msra.mxu0 0.0
        %572 = vmatprep.subr.mxu0 0.0
        %573 = vmatpush1.msra.mxu0 0.0
        %574 = vmatprep.subr.mxu0 0.0
        %575 = vmatpush1.msra.mxu0 0.0
        %576 = vmatprep.subr.mxu0 0.0
        %577 = vmatpush1.msra.mxu0 0.0
        %578 = vmatprep.subr.mxu0 0.0
        %579 = vmatpush1.msra.mxu0 0.0
        %580 = vmatprep.subr.mxu0 0.0
        %581 = vmatpush1.msra.mxu0 0.0
        %582 = vmatprep.subr.mxu0 0.0
        %583 = vmatpush1.msra.mxu0 0.0
        %584 = vmatprep.subr.mxu0 0.0
        %585 = vmatpush1.msra.mxu0 0.0
        %586 = vmatprep.subr.mxu0 0.0
        %587 = vmatpush1.msra.mxu0 0.0
        %588 = vmatprep.subr.mxu0 0.0
        %589 = vmatpush1.msra.mxu0 0.0
        %590 = vmatprep.subr.mxu0 0.0
        %591 = vmatpush1.msra.mxu0 0.0
        %592 = vmatprep.subr.mxu0 0.0
        %593 = vmatpush1.msra.mxu0 0.0
        %594 = vmatprep.subr.mxu0 0.0
        %595 = vmatpush1.msra.mxu0 0.0
        %596 = vmatprep.subr.mxu0 0.0
        %597 = vmatpush1.msra.mxu0 %v167
        %598 = vmatprep.subr.mxu0 0.0
        %599 = vmatpush1.msra.mxu0 %v166
        %600 = vmatprep.subr.mxu0 0.0
        %601 = vmatpush2.msra.mxu0 0.0
        %602 = vmatprep.subr.mxu0 0.0
        %603 = vmatpush2.msra.mxu0 0.0
        %604 = vmatprep.subr.mxu0 0.0
        %605 = vmatpush2.msra.mxu0 0.0
        %606 = vmatprep.subr.mxu0 0.0
        %607 = vmatpush2.msra.mxu0 0.0
        %608 = vmatprep.subr.mxu0 0.0
        %609 = vmatpush2.msra.mxu0 0.0
        %610 = vmatprep.subr.mxu0 0.0
        %611 = vmatpush2.msra.mxu0 0.0
        %612 = vmatprep.subr.mxu0 0.0
        %613 = vmatpush2.msra.mxu0 0.0
        %614 = vmatprep.subr.mxu0 0.0
        %615 = vmatpush2.msra.mxu0 0.0
        %616 = vmatprep.subr.mxu0 0.0
        %617 = vmatpush2.msra.mxu0 0.0
        %618 = vmatprep.subr.mxu0 0.0
        %619 = vmatpush2.msra.mxu0 0.0
        %620 = vmatprep.subr.mxu0 0.0
        %621 = vmatpush2.msra.mxu0 0.0
        %622 = vmatprep.subr.mxu0 0.0
        %623 = vmatpush2.msra.mxu0 0.0
        %624 = vmatprep.subr.mxu0 0.0
        %625 = vmatpush2.msra.mxu0 0.0
        %626 = vmatprep.subr.mxu0 0.0
        %627 = vmatpush2.msra.mxu0 0.0
        %628 = vmatprep.subr.mxu0 0.0
        %629 = vmatpush2.msra.mxu0 0.0
        %630 = vmatprep.subr.mxu0 0.0
        %631 = vmatpush2.msra.mxu0 0.0
        %632 = vmatprep.mubr.f32.mxu0 0.0
        %633 = vmatmul.mubr.f32.gmra.mxu0 %v566
        %v634 = vpop.f32.mrf.mxu0
        %v635 = vadd.f32 0.0, %v634
        %v636 = vpop.f32.mrf.mxu0
        %637 = vdwg.mxu0
        %s638 = scalar_lea.vmem %s152, 80 [#allocation5]
        %639 = vst.msk [vmem:[%s638] sm:$0xff] %vm243, %v635
        %s640 = scalar_lea.vmem %s152, 88 [#allocation5]
        %641 = vst.msk [vmem:[%s640] sm:$0xff] %vm243, 0.0
        %s642 = scalar_lea.vmem %s134, 48 [#allocation2]
        %v643 = vld [vmem:[%s642] sm:$0xff]
        %v645 = vsel %vm169, %v643, 0
        %647 = vmatprep.subr.mxu0 0.0
        %648 = vmatpush1.msra.mxu0 0.0
        %649 = vmatprep.subr.mxu0 0.0
        %650 = vmatpush1.msra.mxu0 0.0
        %651 = vmatprep.subr.mxu0 0.0
        %652 = vmatpush1.msra.mxu0 0.0
        %653 = vmatprep.subr.mxu0 0.0
        %654 = vmatpush1.msra.mxu0 0.0
        %655 = vmatprep.subr.mxu0 0.0
        %656 = vmatpush1.msra.mxu0 0.0
        %657 = vmatprep.subr.mxu0 0.0
        %658 = vmatpush1.msra.mxu0 0.0
        %659 = vmatprep.subr.mxu0 0.0
        %660 = vmatpush1.msra.mxu0 0.0
        %661 = vmatprep.subr.mxu0 0.0
        %662 = vmatpush1.msra.mxu0 0.0
        %663 = vmatprep.subr.mxu0 0.0
        %664 = vmatpush1.msra.mxu0 0.0
        %665 = vmatprep.subr.mxu0 0.0
        %666 = vmatpush1.msra.mxu0 0.0
        %667 = vmatprep.subr.mxu0 0.0
        %668 = vmatpush1.msra.mxu0 0.0
        %669 = vmatprep.subr.mxu0 0.0
        %670 = vmatpush1.msra.mxu0 0.0
        %671 = vmatprep.subr.mxu0 0.0
        %672 = vmatpush1.msra.mxu0 0.0
        %673 = vmatprep.subr.mxu0 0.0
        %674 = vmatpush1.msra.mxu0 0.0
        %675 = vmatprep.subr.mxu0 0.0
        %676 = vmatpush1.msra.mxu0 %v167
        %677 = vmatprep.subr.mxu0 0.0
        %678 = vmatpush1.msra.mxu0 %v166
        %679 = vmatprep.subr.mxu0 0.0
        %680 = vmatpush2.msra.mxu0 0.0
        %681 = vmatprep.subr.mxu0 0.0
        %682 = vmatpush2.msra.mxu0 0.0
        %683 = vmatprep.subr.mxu0 0.0
        %684 = vmatpush2.msra.mxu0 0.0
        %685 = vmatprep.subr.mxu0 0.0
        %686 = vmatpush2.msra.mxu0 0.0
        %687 = vmatprep.subr.mxu0 0.0
        %688 = vmatpush2.msra.mxu0 0.0
        %689 = vmatprep.subr.mxu0 0.0
        %690 = vmatpush2.msra.mxu0 0.0
        %691 = vmatprep.subr.mxu0 0.0
        %692 = vmatpush2.msra.mxu0 0.0
        %693 = vmatprep.subr.mxu0 0.0
        %694 = vmatpush2.msra.mxu0 0.0
        %695 = vmatprep.subr.mxu0 0.0
        %696 = vmatpush2.msra.mxu0 0.0
        %697 = vmatprep.subr.mxu0 0.0
        %698 = vmatpush2.msra.mxu0 0.0
        %699 = vmatprep.subr.mxu0 0.0
        %700 = vmatpush2.msra.mxu0 0.0
        %701 = vmatprep.subr.mxu0 0.0
        %702 = vmatpush2.msra.mxu0 0.0
        %703 = vmatprep.subr.mxu0 0.0
        %704 = vmatpush2.msra.mxu0 0.0
        %705 = vmatprep.subr.mxu0 0.0
        %706 = vmatpush2.msra.mxu0 0.0
        %707 = vmatprep.subr.mxu0 0.0
        %708 = vmatpush2.msra.mxu0 0.0
        %709 = vmatprep.subr.mxu0 0.0
        %710 = vmatpush2.msra.mxu0 0.0
        %711 = vmatprep.mubr.f32.mxu0 0.0
        %712 = vmatmul.mubr.f32.gmra.mxu0 %v645
        %v713 = vpop.f32.mrf.mxu0
        %v714 = vadd.f32 0.0, %v713
        %v715 = vpop.f32.mrf.mxu0
        %716 = vdwg.mxu0
        %s717 = scalar_lea.vmem %s152, 96 [#allocation5]
        %718 = vst.msk [vmem:[%s717] sm:$0xff] %vm243, %v714
        %s719 = scalar_lea.vmem %s152, 104 [#allocation5]
        %720 = vst.msk [vmem:[%s719] sm:$0xff] %vm243, 0.0
        %s721 = scalar_lea.vmem %s134, 56 [#allocation2]
        %v722 = vld [vmem:[%s721] sm:$0xff]
        %v724 = vsel %vm169, %v722, 0
        %726 = vmatprep.subr.mxu0 0.0
        %727 = vmatpush1.msra.mxu0 0.0
        %728 = vmatprep.subr.mxu0 0.0
        %729 = vmatpush1.msra.mxu0 0.0
        %730 = vmatprep.subr.mxu0 0.0
        %731 = vmatpush1.msra.mxu0 0.0
        %732 = vmatprep.subr.mxu0 0.0
        %733 = vmatpush1.msra.mxu0 0.0
        %734 = vmatprep.subr.mxu0 0.0
        %735 = vmatpush1.msra.mxu0 0.0
        %736 = vmatprep.subr.mxu0 0.0
        %737 = vmatpush1.msra.mxu0 0.0
        %738 = vmatprep.subr.mxu0 0.0
        %739 = vmatpush1.msra.mxu0 0.0
        %740 = vmatprep.subr.mxu0 0.0
        %741 = vmatpush1.msra.mxu0 0.0
        %742 = vmatprep.subr.mxu0 0.0
        %743 = vmatpush1.msra.mxu0 0.0
        %744 = vmatprep.subr.mxu0 0.0
        %745 = vmatpush1.msra.mxu0 0.0
        %746 = vmatprep.subr.mxu0 0.0
        %747 = vmatpush1.msra.mxu0 0.0
        %748 = vmatprep.subr.mxu0 0.0
        %749 = vmatpush1.msra.mxu0 0.0
        %750 = vmatprep.subr.mxu0 0.0
        %751 = vmatpush1.msra.mxu0 0.0
        %752 = vmatprep.subr.mxu0 0.0
        %753 = vmatpush1.msra.mxu0 0.0
        %754 = vmatprep.subr.mxu0 0.0
        %755 = vmatpush1.msra.mxu0 %v167
        %756 = vmatprep.subr.mxu0 0.0
        %757 = vmatpush1.msra.mxu0 %v166
        %758 = vmatprep.subr.mxu0 0.0
        %759 = vmatpush2.msra.mxu0 0.0
        %760 = vmatprep.subr.mxu0 0.0
        %761 = vmatpush2.msra.mxu0 0.0
        %762 = vmatprep.subr.mxu0 0.0
        %763 = vmatpush2.msra.mxu0 0.0
        %764 = vmatprep.subr.mxu0 0.0
        %765 = vmatpush2.msra.mxu0 0.0
        %766 = vmatprep.subr.mxu0 0.0
        %767 = vmatpush2.msra.mxu0 0.0
        %768 = vmatprep.subr.mxu0 0.0
        %769 = vmatpush2.msra.mxu0 0.0
        %770 = vmatprep.subr.mxu0 0.0
        %771 = vmatpush2.msra.mxu0 0.0
        %772 = vmatprep.subr.mxu0 0.0
        %773 = vmatpush2.msra.mxu0 0.0
        %774 = vmatprep.subr.mxu0 0.0
        %775 = vmatpush2.msra.mxu0 0.0
        %776 = vmatprep.subr.mxu0 0.0
        %777 = vmatpush2.msra.mxu0 0.0
        %778 = vmatprep.subr.mxu0 0.0
        %779 = vmatpush2.msra.mxu0 0.0
        %780 = vmatprep.subr.mxu0 0.0
        %781 = vmatpush2.msra.mxu0 0.0
        %782 = vmatprep.subr.mxu0 0.0
        %783 = vmatpush2.msra.mxu0 0.0
        %784 = vmatprep.subr.mxu0 0.0
        %785 = vmatpush2.msra.mxu0 0.0
        %786 = vmatprep.subr.mxu0 0.0
        %787 = vmatpush2.msra.mxu0 0.0
        %788 = vmatprep.subr.mxu0 0.0
        %789 = vmatpush2.msra.mxu0 0.0
        %790 = vmatprep.mubr.f32.mxu0 0.0
        %791 = vmatmul.mubr.f32.gmra.mxu0 %v724
        %v792 = vpop.f32.mrf.mxu0
        %v793 = vadd.f32 0.0, %v792
        %v794 = vpop.f32.mrf.mxu0
        %795 = vdwg.mxu0
        %s796 = scalar_lea.vmem %s152, 112 [#allocation5]
        %797 = vst.msk [vmem:[%s796] sm:$0xff] %vm243, %v793
        %s798 = scalar_lea.vmem %s152, 120 [#allocation5]
        %799 = vst.msk [vmem:[%s798] sm:$0xff] %vm243, 0.0
        %s800 = sand.u32 %s68, 1
        %s801 = scalar_lea.sflag [#allocation4], %s800
        %s802 = sand.u32 %s68, 1
        %s803 = smul.addr %s802, 128
        %s804 = scalar_lea.vmem [#allocation5], %s803
        // Predicated region
        $region29: #{tpu_custom_call.1} parent=23 // pred_check
          %p805 = pneg %p78
        $region30: #{tpu_custom_call.1} parent=23 // pred_check_branch
          %807 = sbr.rel (%p805) target = $region32
        $region31: #{tpu_custom_call.1} parent=23 // pred_region
          %s808 = smul.u32 16, %s23
          %s810 = ssub.s32 2048, 2048
          %811 = vsyncadd %s801, %s810
          %s812 = smul.addr %s22, 16
          %s813 = sadd.s32 %s808, %s812
          %s814 = smul.addr %s813, 128
          %s815 = scalar_lea.hbm %s1, %s814
          %s816 = sshll.u32 %s804, 4
          %s817 = int_to_ptr.vmem [resolvable:$true] %s816
          %822 = dma.vmem_to_hbm [thread:$0]  %s817, 2048, %s815, %s801, 128, 128, 8
        $region32: #{tpu_custom_call.1} parent=23 // pred_fallthru
          _
      $region24: #{tpu_custom_call.1} parent=5 // pred_fallthru
        _
      %p823 = scmp.le.s32.totalorder 2, %s13
      // Predicated region
      $region33: #{tpu_custom_call.1} parent=5 // pred_check
        %p824 = pneg %p823
      $region34: #{tpu_custom_call.1} parent=5 // pred_check_branch
        %826 = sbr.rel (%p824) target = $region36
      $region35: #{tpu_custom_call.1} parent=5 // pred_region
        %s827 = ssub.s32 %s13, 2
        // Predicated region
        $region37: #{tpu_custom_call.1} parent=35 // pred_check
          %p828 = pneg %p84
        $region38: #{tpu_custom_call.1} parent=35 // pred_check_branch
          %830 = sbr.rel (%p828) target = $region40
        $region39: #{tpu_custom_call.1} parent=35 // pred_region
          %s831 = sand.u32 %s69, 1
          %s832 = scalar_lea.sflag [#allocation4], %s831
          %s833 = sand.u32 %s69, 1
          %s834 = smul.addr %s833, 128
          %s835 = scalar_lea.vmem [#allocation5], %s834
          %836 = dma.done %s832, 2048
        $region40: #{tpu_custom_call.1} parent=35 // pred_fallthru
          _
      $region36: #{tpu_custom_call.1} parent=5 // pred_fallthru
        _
    $region6: #{tpu_custom_call.1} parent=1 // loop_footer
      %s17 = sadd.s32 1, %s13
    $region7: #{tpu_custom_call.1} parent=1 // loop_footer_branch
      %12 = sbr.rel target = $region3
    $region8: #{tpu_custom_call.1} parent=1 // loop_exit
      _
    %837 = vsyncpa [#allocation3], 1
    %s838 = scalar_lea.sflag [#allocation3], 1
    %839 = vsyncpa %s838, 1
    %840 = vsyncpa [#allocation4], 1
    %s841 = scalar_lea.sflag [#allocation4], 1
    %842 = vsyncpa %s841, 1

</llo_original>
